<compile_context>
chip_gen: v6e
topology: v6e:2x2x1
jax: 0.10.0
libtpu: 0.0.40
codegen_flags: <defaults>
</compile_context>

<pallas_src>
import functools

import jax
import jax.numpy as jnp
from jax.experimental import pallas as pl
from jax.experimental.pallas import tpu as pltpu


def _round_up8(n):
    return ((n + 7) // 8) * 8


def finetune_kernel(x_ref, mask_ref, w_ref, i_ref, r_ref, *, layers, img_w):
    cp = x_ref.shape[0]                  # padded channel rows (multiple of 8)
    lanes = x_ref.shape[1]               # images_per_block * H * W
    x = x_ref[...]                       # (cp, lanes) f32

    # Ones-row block appended to the stacked taps; the bias sits in the
    # matching weight column, so bias-add fuses into the MXU accumulate.
    ones_blk = (jax.lax.broadcasted_iota(jnp.int32, (8, lanes), 0) == 0
                ).astype(jnp.float32)

    def stacked_taps(fea):
        """Build the (9*cp + 8, lanes) RHS: rolled+masked taps + ones row."""
        parts = []
        k = 0
        for dy in (-1, 0, 1):
            for dx in (-1, 0, 1):
                shift = (-(dy * img_w + dx)) % lanes       # static, >= 0
                tap = fea if shift == 0 else pltpu.roll(fea, shift, axis=1)
                if k != 4:                                 # centre tap mask==1
                    tap = tap * mask_ref[pl.ds(k, 1), :]   # (1,lanes) bcast
                parts.append(tap)
                k += 1
        parts.append(ones_blk)
        return jnp.concatenate(parts, axis=0)

    def conv3x3(fea, blk):
        w = w_ref[pl.ds(blk * cp, cp), :]                  # (cp, 9*cp+8)
        return jnp.dot(w, stacked_taps(fea),
                       preferred_element_type=jnp.float32)

    # in_conv + ReLU
    fea = jnp.maximum(conv3x3(x, 0), 0.0)

    # residual blocks (shared conv; BatchNorm folded on host, eval mode).
    # TODO(synk): train-mode BatchNorm batch statistics are not reproduced;
    # eval-mode running stats folded into the conv are used instead.
    for _ in range(layers):
        fea = fea + jnp.maximum(conv3x3(fea, 1), 0.0)

    # out_conv + Sigmoid
    out = jax.nn.sigmoid(conv3x3(fea, 2))

    illu = jnp.clip(out + x, 0.1, 0.6)                     # EnhanceNetwork i
    refl = jnp.clip(x * pl.reciprocal(illu, approx=True), 0.0, 1.0)
    i_ref[...] = illu[:3, :].astype(i_ref.dtype)
    r_ref[...] = refl[:3, :].astype(r_ref.dtype)


def _num_lane_blocks(n_images):
    """2 lane blocks on chips with 2 TensorCores per Pallas device, else 1."""
    try:
        kind = jax.devices()[0].device_kind.lower()
    except Exception:
        kind = ""
    two_tc = any(t in kind for t in ("v7", "v4", "v5p"))
    return 2 if (two_tc and n_images % 2 == 0) else 1


def finetune_forward(x_nchw, params, *, layers, lane_blocks=None):
    N, cin, H, W = x_nchw.shape
    assert cin == 3
    HW = H * W
    C = int(params["w_mid"].shape[0])
    P = _round_up8(max(3, C))            # padded channel rows
    KPAD = 9 * P + 8                     # stacked-tap rows (+ ones block)
    eps = 1e-5

    if lane_blocks is None:
        lane_blocks = _num_lane_blocks(N)
    assert N % lane_blocks == 0
    ipb = N // lane_blocks               # images per grid step
    BL = ipb * HW                        # lane-block width
    assert BL % 128 == 0, "flattened spatial block must be lane-aligned"

    # ---- host-side constant packing -------------------------------------
    def pack_conv(w, b):
        # (Cout,Cin,3,3) torch layout -> (P, KPAD): tap k occupies columns
        # [k*P, k*P+Cin); the bias sits in column 9*P (the ones row).
        co, ci = int(w.shape[0]), int(w.shape[1])
        w9 = jnp.transpose(w, (2, 3, 0, 1)).reshape(9, co, ci)
        m = jnp.zeros((P, KPAD), jnp.float32)
        for k in range(9):
            m = m.at[:co, k * P:k * P + ci].set(w9[k])
        return m.at[:co, 9 * P].set(b)

    # Fold eval-mode BatchNorm into the shared mid conv.
    scale = params["bn_gamma"] / jnp.sqrt(params["bn_var"] + eps)
    w_mid_eff = params["w_mid"] * scale[:, None, None, None]
    b_mid_eff = (params["b_mid"] - params["bn_mean"]) * scale + params["bn_beta"]

    w_all = jnp.concatenate([pack_conv(params["w_in"], params["b_in"]),
                             pack_conv(w_mid_eff, b_mid_eff),
                             pack_conv(params["w_out"], params["b_out"])],
                            axis=0)                        # (3P, KPAD)

    # Per-tap edge-validity masks over ONE lane block (identical per block).
    q = jnp.arange(BL, dtype=jnp.int32) % HW
    h_idx, w_idx = q // W, q % W
    masks = jnp.stack([
        ((h_idx + dy >= 0) & (h_idx + dy < H) &
         (w_idx + dx >= 0) & (w_idx + dx < W)).astype(jnp.float32)
        for dy in (-1, 0, 1) for dx in (-1, 0, 1)])        # (9, BL)

    # Lane-dense input: (P, N*HW); image n occupies lanes [n*HW, (n+1)*HW).
    x_cm = jnp.transpose(x_nchw.reshape(N, 3, HW).astype(jnp.float32),
                         (1, 0, 2)).reshape(3, N * HW)
    x_flat = jnp.zeros((P, N * HW), jnp.float32).at[:3, :].set(x_cm)

    kernel = functools.partial(finetune_kernel, layers=layers, img_w=W)

    i_flat, r_flat = pl.pallas_call(
        kernel,
        out_shape=(jax.ShapeDtypeStruct((3, N * HW), jnp.float32),
                   jax.ShapeDtypeStruct((3, N * HW), jnp.float32)),
        grid_spec=pltpu.PrefetchScalarGridSpec(
            num_scalar_prefetch=0,
            grid=(lane_blocks,),
            in_specs=[
                pl.BlockSpec((P, BL), lambda g: (0, g)),        # x (lane-dense)
                pl.BlockSpec((9, BL), lambda g: (0, 0)),        # tap masks
                pl.BlockSpec((3 * P, KPAD), lambda g: (0, 0)),  # packed convs
            ],
            out_specs=[pl.BlockSpec((3, BL), lambda g: (0, g)),
                       pl.BlockSpec((3, BL), lambda g: (0, g))],
        ),
        compiler_params=pltpu.CompilerParams(
            dimension_semantics=("parallel",)),
    )(x_flat, masks, w_all)

    i_out = jnp.transpose(i_flat.reshape(3, N, H, W), (1, 0, 2, 3))
    r_out = jnp.transpose(r_flat.reshape(3, N, H, W), (1, 0, 2, 3))
    return i_out, r_out


def init_params(key, channels):
    """Deterministic PyTorch-default-style init (torch.load is unavailable)."""
    ks = jax.random.split(key, 6)
    C = channels

    def conv_w(k, cout, cin):
        bound = 1.0 / jnp.sqrt(jnp.float32(cin * 9))
        return jax.random.uniform(k, (cout, cin, 3, 3), jnp.float32,
                                  -bound, bound)

    def conv_b(k, cout, cin):
        bound = 1.0 / jnp.sqrt(jnp.float32(cin * 9))
        return jax.random.uniform(k, (cout,), jnp.float32, -bound, bound)

    return {
        "w_in":  conv_w(ks[0], C, 3), "b_in":  conv_b(ks[1], C, 3),
        "w_mid": conv_w(ks[2], C, C), "b_mid": conv_b(ks[3], C, C),
        "bn_gamma": jnp.ones((C,), jnp.float32),
        "bn_beta":  jnp.zeros((C,), jnp.float32),
        "bn_mean":  jnp.zeros((C,), jnp.float32),
        "bn_var":   jnp.ones((C,), jnp.float32),
        "w_out": conv_w(ks[4], 3, C), "b_out": conv_b(ks[5], 3, C),
    }


def _conv2d_ref(x, w, b):
    y = jax.lax.conv_general_dilated(
        x, w, window_strides=(1, 1), padding=((1, 1), (1, 1)),
        dimension_numbers=("NCHW", "OIHW", "NCHW"))
    return y + b[None, :, None, None]


def finetune_reference(x, params, *, layers, eps=1e-5):
    """Pure-JAX forward (eval-mode BN) used only to validate the kernel."""
    fea = jax.nn.relu(_conv2d_ref(x, params["w_in"], params["b_in"]))
    scale = params["bn_gamma"] / jnp.sqrt(params["bn_var"] + eps)

    def bn(y):
        return ((y - params["bn_mean"][None, :, None, None])
                * scale[None, :, None, None]
                + params["bn_beta"][None, :, None, None])

    for _ in range(layers):
        fea = fea + jax.nn.relu(bn(_conv2d_ref(fea, params["w_mid"],
                                               params["b_mid"])))
    out = jax.nn.sigmoid(_conv2d_ref(fea, params["w_out"], params["b_out"]))
    illu = jnp.clip(out + x, 0.1, 0.6)
    refl = jnp.clip(x / illu, 0.0, 1.0)
    return illu, refl


if __name__ == "__main__":
    # Finetunemodel builds EnhanceNetwork(layers=1, channels=3).
    layers, channels = 1, 3
    N, H, W = 2, 16, 16

    key = jax.random.PRNGKey(0)
    kx, kp = jax.random.split(key)
    x = jax.random.uniform(kx, (N, 3, H, W), jnp.float32)   # NCHW like PyTorch
    params = init_params(kp, channels)

    i, r = finetune_forward(x, params, layers=layers)
    i, r = jax.block_until_ready((i, r))

    i_ref, r_ref = finetune_reference(x, params, layers=layers)
    assert i.shape == (N, 3, H, W) and r.shape == (N, 3, H, W)
    # 5e-3 tolerance covers the EUP approximate reciprocal (illu >= 0.1).
    assert bool(jnp.allclose(i, i_ref, atol=5e-3, rtol=5e-3)), \
        float(jnp.max(jnp.abs(i - i_ref)))
    assert bool(jnp.allclose(r, r_ref, atol=5e-3, rtol=5e-3)), \
        float(jnp.max(jnp.abs(r - r_ref)))
    print("KERNEL_OK")
</pallas_src>

<mosaic_0001>
module attributes {stable_mosaic.version = 11 : i64} {
  func.func @finetune_kernel(%arg0: i32, %arg1: memref<8x512xf32, #tpu.memory_space<vmem>>, %arg2: memref<9x512xf32, #tpu.memory_space<vmem>>, %arg3: memref<24x80xf32, #tpu.memory_space<vmem>>, %arg4: memref<3x512xf32, #tpu.memory_space<vmem>>, %arg5: memref<3x512xf32, #tpu.memory_space<vmem>>) attributes {dimension_semantics = [#tpu.dimension_semantics<parallel>], iteration_bounds = array<i64: 1>, scalar_prefetch = 0 : i64, scratch_operands = 0 : i64, tpu.core_type = #tpu.core_type<tc>, window_params = [{transform_indices = @transform_0, window_bounds = array<i64: 8, 512>}, {pipeline_mode = #tpu.pipeline_mode<synchronous>, transform_indices = @transform_1, window_bounds = array<i64: 9, 512>}, {pipeline_mode = #tpu.pipeline_mode<synchronous>, transform_indices = @transform_2, window_bounds = array<i64: 24, 80>}, {transform_indices = @transform_3, window_bounds = array<i64: 3, 512>}, {transform_indices = @transform_4, window_bounds = array<i64: 3, 512>}]} {
    %c0 = arith.constant 0 : index
    %c0_0 = arith.constant 0 : index
    %0 = vector.load %arg1[%c0, %c0_0] : memref<8x512xf32, #tpu.memory_space<vmem>>, vector<8x512xf32>
    %1 = tpu.iota {dimensions = array<i32: 0>} : vector<8x512xi32>
    %c0_i32 = arith.constant 0 : i32
    %2 = vector.broadcast %c0_i32 : i32 to vector<8x512xi32>
    %3 = arith.cmpi eq, %1, %2 : vector<8x512xi32>
    %4 = arith.extui %3 : vector<8x512xi1> to vector<8x512xi32>
    %5 = arith.sitofp %4 : vector<8x512xi32> to vector<8x512xf32>
    %c0_1 = arith.constant 0 : index
    %c0_2 = arith.constant 0 : index
    %6 = vector.load %arg3[%c0_1, %c0_2] : memref<24x80xf32, #tpu.memory_space<vmem>>, vector<8x80xf32>
    %c17_i32 = arith.constant 17 : i32
    %7 = tpu.dynamic_rotate %0 by %c17_i32 dim 1 : vector<8x512xf32>, i32 -> vector<8x512xf32>
    %c0_3 = arith.constant 0 : index
    %c0_4 = arith.constant 0 : index
    %8 = vector.load %arg2[%c0_3, %c0_4] : memref<9x512xf32, #tpu.memory_space<vmem>>, vector<1x512xf32>
    %9 = vector.broadcast %8 : vector<1x512xf32> to vector<8x512xf32>
    %10 = arith.mulf %7, %9 : vector<8x512xf32>
    %c16_i32 = arith.constant 16 : i32
    %11 = tpu.dynamic_rotate %0 by %c16_i32 dim 1 : vector<8x512xf32>, i32 -> vector<8x512xf32>
    %c1 = arith.constant 1 : index
    %c0_5 = arith.constant 0 : index
    %12 = vector.load %arg2[%c1, %c0_5] : memref<9x512xf32, #tpu.memory_space<vmem>>, vector<1x512xf32>
    %13 = vector.broadcast %12 : vector<1x512xf32> to vector<8x512xf32>
    %14 = arith.mulf %11, %13 : vector<8x512xf32>
    %c15_i32 = arith.constant 15 : i32
    %15 = tpu.dynamic_rotate %0 by %c15_i32 dim 1 : vector<8x512xf32>, i32 -> vector<8x512xf32>
    %c2 = arith.constant 2 : index
    %c0_6 = arith.constant 0 : index
    %16 = vector.load %arg2[%c2, %c0_6] : memref<9x512xf32, #tpu.memory_space<vmem>>, vector<1x512xf32>
    %17 = vector.broadcast %16 : vector<1x512xf32> to vector<8x512xf32>
    %18 = arith.mulf %15, %17 : vector<8x512xf32>
    %c1_i32 = arith.constant 1 : i32
    %19 = tpu.dynamic_rotate %0 by %c1_i32 dim 1 : vector<8x512xf32>, i32 -> vector<8x512xf32>
    %c3 = arith.constant 3 : index
    %c0_7 = arith.constant 0 : index
    %20 = vector.load %arg2[%c3, %c0_7] : memref<9x512xf32, #tpu.memory_space<vmem>>, vector<1x512xf32>
    %21 = vector.broadcast %20 : vector<1x512xf32> to vector<8x512xf32>
    %22 = arith.mulf %19, %21 : vector<8x512xf32>
    %c511_i32 = arith.constant 511 : i32
    %23 = tpu.dynamic_rotate %0 by %c511_i32 dim 1 : vector<8x512xf32>, i32 -> vector<8x512xf32>
    %c5 = arith.constant 5 : index
    %c0_8 = arith.constant 0 : index
    %24 = vector.load %arg2[%c5, %c0_8] : memref<9x512xf32, #tpu.memory_space<vmem>>, vector<1x512xf32>
    %25 = vector.broadcast %24 : vector<1x512xf32> to vector<8x512xf32>
    %26 = arith.mulf %23, %25 : vector<8x512xf32>
    %c497_i32 = arith.constant 497 : i32
    %27 = tpu.dynamic_rotate %0 by %c497_i32 dim 1 : vector<8x512xf32>, i32 -> vector<8x512xf32>
    %c6 = arith.constant 6 : index
    %c0_9 = arith.constant 0 : index
    %28 = vector.load %arg2[%c6, %c0_9] : memref<9x512xf32, #tpu.memory_space<vmem>>, vector<1x512xf32>
    %29 = vector.broadcast %28 : vector<1x512xf32> to vector<8x512xf32>
    %30 = arith.mulf %27, %29 : vector<8x512xf32>
    %c496_i32 = arith.constant 496 : i32
    %31 = tpu.dynamic_rotate %0 by %c496_i32 dim 1 : vector<8x512xf32>, i32 -> vector<8x512xf32>
    %c7 = arith.constant 7 : index
    %c0_10 = arith.constant 0 : index
    %32 = vector.load %arg2[%c7, %c0_10] : memref<9x512xf32, #tpu.memory_space<vmem>>, vector<1x512xf32>
    %33 = vector.broadcast %32 : vector<1x512xf32> to vector<8x512xf32>
    %34 = arith.mulf %31, %33 : vector<8x512xf32>
    %c495_i32 = arith.constant 495 : i32
    %35 = tpu.dynamic_rotate %0 by %c495_i32 dim 1 : vector<8x512xf32>, i32 -> vector<8x512xf32>
    %c8 = arith.constant 8 : index
    %c0_11 = arith.constant 0 : index
    %36 = vector.load %arg2[%c8, %c0_11] : memref<9x512xf32, #tpu.memory_space<vmem>>, vector<1x512xf32>
    %37 = vector.broadcast %36 : vector<1x512xf32> to vector<8x512xf32>
    %38 = arith.mulf %35, %37 : vector<8x512xf32>
    %39 = tpu.concatenate %10, %14, %18, %22, %0, %26, %30, %34, %38, %5 in 0 : vector<8x512xf32>, vector<8x512xf32>, vector<8x512xf32>, vector<8x512xf32>, vector<8x512xf32>, vector<8x512xf32>, vector<8x512xf32>, vector<8x512xf32>, vector<8x512xf32>, vector<8x512xf32> -> vector<80x512xf32>
    %cst = arith.constant dense<0.000000e+00> : vector<8x512xf32>
    %40 = tpu.matmul %6, %39, %cst {dimension_numbers = #tpu.dot_dimension_numbers<[1], [0], [0], [1], [0, 0, 1, 1], [], []>} : vector<8x80xf32>, vector<80x512xf32>, vector<8x512xf32> -> vector<8x512xf32>
    %cst_12 = arith.constant 0.000000e+00 : f32
    %41 = vector.broadcast %cst_12 : f32 to vector<8x512xf32>
    %42 = arith.maximumf %40, %41 : vector<8x512xf32>
    %c8_13 = arith.constant 8 : index
    %c0_14 = arith.constant 0 : index
    %43 = vector.load %arg3[%c8_13, %c0_14] : memref<24x80xf32, #tpu.memory_space<vmem>>, vector<8x80xf32>
    %c17_i32_15 = arith.constant 17 : i32
    %44 = tpu.dynamic_rotate %42 by %c17_i32_15 dim 1 : vector<8x512xf32>, i32 -> vector<8x512xf32>
    %c0_16 = arith.constant 0 : index
    %c0_17 = arith.constant 0 : index
    %45 = vector.load %arg2[%c0_16, %c0_17] : memref<9x512xf32, #tpu.memory_space<vmem>>, vector<1x512xf32>
    %46 = vector.broadcast %45 : vector<1x512xf32> to vector<8x512xf32>
    %47 = arith.mulf %44, %46 : vector<8x512xf32>
    %c16_i32_18 = arith.constant 16 : i32
    %48 = tpu.dynamic_rotate %42 by %c16_i32_18 dim 1 : vector<8x512xf32>, i32 -> vector<8x512xf32>
    %c1_19 = arith.constant 1 : index
    %c0_20 = arith.constant 0 : index
    %49 = vector.load %arg2[%c1_19, %c0_20] : memref<9x512xf32, #tpu.memory_space<vmem>>, vector<1x512xf32>
    %50 = vector.broadcast %49 : vector<1x512xf32> to vector<8x512xf32>
    %51 = arith.mulf %48, %50 : vector<8x512xf32>
    %c15_i32_21 = arith.constant 15 : i32
    %52 = tpu.dynamic_rotate %42 by %c15_i32_21 dim 1 : vector<8x512xf32>, i32 -> vector<8x512xf32>
    %c2_22 = arith.constant 2 : index
    %c0_23 = arith.constant 0 : index
    %53 = vector.load %arg2[%c2_22, %c0_23] : memref<9x512xf32, #tpu.memory_space<vmem>>, vector<1x512xf32>
    %54 = vector.broadcast %53 : vector<1x512xf32> to vector<8x512xf32>
    %55 = arith.mulf %52, %54 : vector<8x512xf32>
    %c1_i32_24 = arith.constant 1 : i32
    %56 = tpu.dynamic_rotate %42 by %c1_i32_24 dim 1 : vector<8x512xf32>, i32 -> vector<8x512xf32>
    %c3_25 = arith.constant 3 : index
    %c0_26 = arith.constant 0 : index
    %57 = vector.load %arg2[%c3_25, %c0_26] : memref<9x512xf32, #tpu.memory_space<vmem>>, vector<1x512xf32>
    %58 = vector.broadcast %57 : vector<1x512xf32> to vector<8x512xf32>
    %59 = arith.mulf %56, %58 : vector<8x512xf32>
    %c511_i32_27 = arith.constant 511 : i32
    %60 = tpu.dynamic_rotate %42 by %c511_i32_27 dim 1 : vector<8x512xf32>, i32 -> vector<8x512xf32>
    %c5_28 = arith.constant 5 : index
    %c0_29 = arith.constant 0 : index
    %61 = vector.load %arg2[%c5_28, %c0_29] : memref<9x512xf32, #tpu.memory_space<vmem>>, vector<1x512xf32>
    %62 = vector.broadcast %61 : vector<1x512xf32> to vector<8x512xf32>
    %63 = arith.mulf %60, %62 : vector<8x512xf32>
    %c497_i32_30 = arith.constant 497 : i32
    %64 = tpu.dynamic_rotate %42 by %c497_i32_30 dim 1 : vector<8x512xf32>, i32 -> vector<8x512xf32>
    %c6_31 = arith.constant 6 : index
    %c0_32 = arith.constant 0 : index
    %65 = vector.load %arg2[%c6_31, %c0_32] : memref<9x512xf32, #tpu.memory_space<vmem>>, vector<1x512xf32>
    %66 = vector.broadcast %65 : vector<1x512xf32> to vector<8x512xf32>
    %67 = arith.mulf %64, %66 : vector<8x512xf32>
    %c496_i32_33 = arith.constant 496 : i32
    %68 = tpu.dynamic_rotate %42 by %c496_i32_33 dim 1 : vector<8x512xf32>, i32 -> vector<8x512xf32>
    %c7_34 = arith.constant 7 : index
    %c0_35 = arith.constant 0 : index
    %69 = vector.load %arg2[%c7_34, %c0_35] : memref<9x512xf32, #tpu.memory_space<vmem>>, vector<1x512xf32>
    %70 = vector.broadcast %69 : vector<1x512xf32> to vector<8x512xf32>
    %71 = arith.mulf %68, %70 : vector<8x512xf32>
    %c495_i32_36 = arith.constant 495 : i32
    %72 = tpu.dynamic_rotate %42 by %c495_i32_36 dim 1 : vector<8x512xf32>, i32 -> vector<8x512xf32>
    %c8_37 = arith.constant 8 : index
    %c0_38 = arith.constant 0 : index
    %73 = vector.load %arg2[%c8_37, %c0_38] : memref<9x512xf32, #tpu.memory_space<vmem>>, vector<1x512xf32>
    %74 = vector.broadcast %73 : vector<1x512xf32> to vector<8x512xf32>
    %75 = arith.mulf %72, %74 : vector<8x512xf32>
    %76 = tpu.concatenate %47, %51, %55, %59, %42, %63, %67, %71, %75, %5 in 0 : vector<8x512xf32>, vector<8x512xf32>, vector<8x512xf32>, vector<8x512xf32>, vector<8x512xf32>, vector<8x512xf32>, vector<8x512xf32>, vector<8x512xf32>, vector<8x512xf32>, vector<8x512xf32> -> vector<80x512xf32>
    %cst_39 = arith.constant dense<0.000000e+00> : vector<8x512xf32>
    %77 = tpu.matmul %43, %76, %cst_39 {dimension_numbers = #tpu.dot_dimension_numbers<[1], [0], [0], [1], [0, 0, 1, 1], [], []>} : vector<8x80xf32>, vector<80x512xf32>, vector<8x512xf32> -> vector<8x512xf32>
    %cst_40 = arith.constant 0.000000e+00 : f32
    %78 = vector.broadcast %cst_40 : f32 to vector<8x512xf32>
    %79 = arith.maximumf %77, %78 : vector<8x512xf32>
    %80 = arith.addf %42, %79 : vector<8x512xf32>
    %c16 = arith.constant 16 : index
    %c0_41 = arith.constant 0 : index
    %81 = vector.load %arg3[%c16, %c0_41] : memref<24x80xf32, #tpu.memory_space<vmem>>, vector<8x80xf32>
    %c17_i32_42 = arith.constant 17 : i32
    %82 = tpu.dynamic_rotate %80 by %c17_i32_42 dim 1 : vector<8x512xf32>, i32 -> vector<8x512xf32>
    %c0_43 = arith.constant 0 : index
    %c0_44 = arith.constant 0 : index
    %83 = vector.load %arg2[%c0_43, %c0_44] : memref<9x512xf32, #tpu.memory_space<vmem>>, vector<1x512xf32>
    %84 = vector.broadcast %83 : vector<1x512xf32> to vector<8x512xf32>
    %85 = arith.mulf %82, %84 : vector<8x512xf32>
    %c16_i32_45 = arith.constant 16 : i32
    %86 = tpu.dynamic_rotate %80 by %c16_i32_45 dim 1 : vector<8x512xf32>, i32 -> vector<8x512xf32>
    %c1_46 = arith.constant 1 : index
    %c0_47 = arith.constant 0 : index
    %87 = vector.load %arg2[%c1_46, %c0_47] : memref<9x512xf32, #tpu.memory_space<vmem>>, vector<1x512xf32>
    %88 = vector.broadcast %87 : vector<1x512xf32> to vector<8x512xf32>
    %89 = arith.mulf %86, %88 : vector<8x512xf32>
    %c15_i32_48 = arith.constant 15 : i32
    %90 = tpu.dynamic_rotate %80 by %c15_i32_48 dim 1 : vector<8x512xf32>, i32 -> vector<8x512xf32>
    %c2_49 = arith.constant 2 : index
    %c0_50 = arith.constant 0 : index
    %91 = vector.load %arg2[%c2_49, %c0_50] : memref<9x512xf32, #tpu.memory_space<vmem>>, vector<1x512xf32>
    %92 = vector.broadcast %91 : vector<1x512xf32> to vector<8x512xf32>
    %93 = arith.mulf %90, %92 : vector<8x512xf32>
    %c1_i32_51 = arith.constant 1 : i32
    %94 = tpu.dynamic_rotate %80 by %c1_i32_51 dim 1 : vector<8x512xf32>, i32 -> vector<8x512xf32>
    %c3_52 = arith.constant 3 : index
    %c0_53 = arith.constant 0 : index
    %95 = vector.load %arg2[%c3_52, %c0_53] : memref<9x512xf32, #tpu.memory_space<vmem>>, vector<1x512xf32>
    %96 = vector.broadcast %95 : vector<1x512xf32> to vector<8x512xf32>
    %97 = arith.mulf %94, %96 : vector<8x512xf32>
    %c511_i32_54 = arith.constant 511 : i32
    %98 = tpu.dynamic_rotate %80 by %c511_i32_54 dim 1 : vector<8x512xf32>, i32 -> vector<8x512xf32>
    %c5_55 = arith.constant 5 : index
    %c0_56 = arith.constant 0 : index
    %99 = vector.load %arg2[%c5_55, %c0_56] : memref<9x512xf32, #tpu.memory_space<vmem>>, vector<1x512xf32>
    %100 = vector.broadcast %99 : vector<1x512xf32> to vector<8x512xf32>
    %101 = arith.mulf %98, %100 : vector<8x512xf32>
    %c497_i32_57 = arith.constant 497 : i32
    %102 = tpu.dynamic_rotate %80 by %c497_i32_57 dim 1 : vector<8x512xf32>, i32 -> vector<8x512xf32>
    %c6_58 = arith.constant 6 : index
    %c0_59 = arith.constant 0 : index
    %103 = vector.load %arg2[%c6_58, %c0_59] : memref<9x512xf32, #tpu.memory_space<vmem>>, vector<1x512xf32>
    %104 = vector.broadcast %103 : vector<1x512xf32> to vector<8x512xf32>
    %105 = arith.mulf %102, %104 : vector<8x512xf32>
    %c496_i32_60 = arith.constant 496 : i32
    %106 = tpu.dynamic_rotate %80 by %c496_i32_60 dim 1 : vector<8x512xf32>, i32 -> vector<8x512xf32>
    %c7_61 = arith.constant 7 : index
    %c0_62 = arith.constant 0 : index
    %107 = vector.load %arg2[%c7_61, %c0_62] : memref<9x512xf32, #tpu.memory_space<vmem>>, vector<1x512xf32>
    %108 = vector.broadcast %107 : vector<1x512xf32> to vector<8x512xf32>
    %109 = arith.mulf %106, %108 : vector<8x512xf32>
    %c495_i32_63 = arith.constant 495 : i32
    %110 = tpu.dynamic_rotate %80 by %c495_i32_63 dim 1 : vector<8x512xf32>, i32 -> vector<8x512xf32>
    %c8_64 = arith.constant 8 : index
    %c0_65 = arith.constant 0 : index
    %111 = vector.load %arg2[%c8_64, %c0_65] : memref<9x512xf32, #tpu.memory_space<vmem>>, vector<1x512xf32>
    %112 = vector.broadcast %111 : vector<1x512xf32> to vector<8x512xf32>
    %113 = arith.mulf %110, %112 : vector<8x512xf32>
    %114 = tpu.concatenate %85, %89, %93, %97, %80, %101, %105, %109, %113, %5 in 0 : vector<8x512xf32>, vector<8x512xf32>, vector<8x512xf32>, vector<8x512xf32>, vector<8x512xf32>, vector<8x512xf32>, vector<8x512xf32>, vector<8x512xf32>, vector<8x512xf32>, vector<8x512xf32> -> vector<80x512xf32>
    %cst_66 = arith.constant dense<0.000000e+00> : vector<8x512xf32>
    %115 = tpu.matmul %81, %114, %cst_66 {dimension_numbers = #tpu.dot_dimension_numbers<[1], [0], [0], [1], [0, 0, 1, 1], [], []>} : vector<8x80xf32>, vector<80x512xf32>, vector<8x512xf32> -> vector<8x512xf32>
    %116 = arith.negf %115 : vector<8x512xf32>
    %117 = math.exp %116 : vector<8x512xf32>
    %cst_67 = arith.constant 1.000000e+00 : f32
    %118 = vector.broadcast %cst_67 : f32 to vector<8x512xf32>
    %119 = arith.addf %118, %117 : vector<8x512xf32>
    %120 = arith.divf %118, %119 : vector<8x512xf32>
    %121 = arith.addf %120, %0 : vector<8x512xf32>
    %cst_68 = arith.constant 1.000000e-01 : f32
    %cst_69 = arith.constant 6.000000e-01 : f32
    %122 = vector.broadcast %cst_68 : f32 to vector<8x512xf32>
    %123 = arith.maximumf %122, %121 : vector<8x512xf32>
    %124 = vector.broadcast %cst_69 : f32 to vector<8x512xf32>
    %125 = arith.minimumf %124, %123 : vector<8x512xf32>
    %126 = tpu.reciprocal %125 {approx = true} : vector<8x512xf32> -> vector<8x512xf32>
    %127 = arith.mulf %0, %126 : vector<8x512xf32>
    %cst_70 = arith.constant 0.000000e+00 : f32
    %cst_71 = arith.constant 1.000000e+00 : f32
    %128 = vector.broadcast %cst_70 : f32 to vector<8x512xf32>
    %129 = arith.maximumf %128, %127 : vector<8x512xf32>
    %130 = vector.broadcast %cst_71 : f32 to vector<8x512xf32>
    %131 = arith.minimumf %130, %129 : vector<8x512xf32>
    %132 = vector.extract_strided_slice %125 {offsets = [0, 0], sizes = [3, 512], strides = [1, 1]} : vector<8x512xf32> to vector<3x512xf32>
    %c0_72 = arith.constant 0 : index
    %c0_73 = arith.constant 0 : index
    %133 = vector.load %arg4[%c0_72, %c0_73] : memref<3x512xf32, #tpu.memory_space<vmem>>, vector<3x512xf32>
    tpu.vector_store %arg4[%c0_72, %c0_73], %132 {strides = array<i32>} : memref<3x512xf32, #tpu.memory_space<vmem>>, vector<3x512xf32>,
    %134 = vector.extract_strided_slice %131 {offsets = [0, 0], sizes = [3, 512], strides = [1, 1]} : vector<8x512xf32> to vector<3x512xf32>
    %c0_74 = arith.constant 0 : index
    %c0_75 = arith.constant 0 : index
    %135 = vector.load %arg5[%c0_74, %c0_75] : memref<3x512xf32, #tpu.memory_space<vmem>>, vector<3x512xf32>
    tpu.vector_store %arg5[%c0_74, %c0_75], %134 {strides = array<i32>} : memref<3x512xf32, #tpu.memory_space<vmem>>, vector<3x512xf32>,
    return
  }
  func.func @transform_0(%arg0: i32) -> (i32, i32) {
    %c0_i32 = arith.constant 0 : i32
    %c0_i32_0 = arith.constant 0 : i32
    return %c0_i32, %arg0 : i32, i32
  }
  func.func @transform_1(%arg0: i32) -> (i32, i32) {
    %c0_i32 = arith.constant 0 : i32
    %c0_i32_0 = arith.constant 0 : i32
    %c0_i32_1 = arith.constant 0 : i32
    return %c0_i32, %c0_i32_0 : i32, i32
  }
  func.func @transform_2(%arg0: i32) -> (i32, i32) {
    %c0_i32 = arith.constant 0 : i32
    %c0_i32_0 = arith.constant 0 : i32
    %c0_i32_1 = arith.constant 0 : i32
    return %c0_i32, %c0_i32_0 : i32, i32
  }
  func.func @transform_3(%arg0: i32) -> (i32, i32) {
    %c0_i32 = arith.constant 0 : i32
    %c0_i32_0 = arith.constant 0 : i32
    return %c0_i32, %arg0 : i32, i32
  }
  func.func @transform_4(%arg0: i32) -> (i32, i32) {
    %c0_i32 = arith.constant 0 : i32
    %c0_i32_0 = arith.constant 0 : i32
    return %c0_i32, %arg0 : i32, i32
  }
}

</mosaic_0001>

<llo_original>
// kernel: tpu_custom_call.1
$region0: #{tpu_custom_call.1}
  #allocation0 [shape = 'u32[]', space=smem, size = 0x4, offset = 0x4, fixed_abs, tag = 'smem constant byte address 0x4 - core index']
  #allocation1 [shape = 'u32[144,128]{1,0:T(1,128)}', space=vmem, size = 0x12000, scoped, tag = 'internal scratch']
  %s0 = inlined_call_operand.hbm [shape: f32[8,512], index: 0, kind: input, shape index: {}]
  %s1 = inlined_call_operand.hbm [shape: f32[9,512], index: 1, kind: input, shape index: {}]
  %s2 = inlined_call_operand.hbm [shape: f32[24,80], index: 2, kind: input, shape index: {}]
  %s3 = inlined_call_operand.hbm [shape: f32[3,512], index: 3, kind: output, shape index: {0}]
  %s4 = inlined_call_operand.hbm [shape: f32[3,512], index: 4, kind: output, shape index: {1}]
  %5 = xla_tuple %s3, %s4
  %s6 = sld [smem:[#allocation0]]
  $region42: #{tpu_custom_call.1} parent=0
    _
  %s8 = ssub.s32 1, %s6
  %s9 = scalar_select 0, %s8, %s6
  $region1: #{tpu_custom_call.1} parent=0
    #allocation2 [shape = 'u8[16384]{0}', space=vmem, size = 0x4000, scoped, tag = 'input window, operand 0, single buffered']
    #allocation3 [shape = 's32[1]{0}', space=sflag, size = 0x4, scoped, tag = 'scoped memory for tpu_custom_call.1']
    #allocation4 [shape = 's32[1]{0}', space=sflag, size = 0x4, scoped, tag = 'scoped memory for tpu_custom_call.1']
    #allocation5 [shape = 'u8[32768]{0}', space=vmem, size = 0x8000, scoped, tag = 'input window, operand 1, single buffered']
    #allocation6 [shape = 's32[1]{0}', space=sflag, size = 0x4, scoped, tag = 'scoped memory for tpu_custom_call.1']
    #allocation7 [shape = 'u8[12288]{0}', space=vmem, size = 0x3000, scoped, tag = 'input window, operand 2, single buffered']
    #allocation8 [shape = 'u8[8192]{0}', space=vmem, size = 0x2000, scoped, tag = 'output window, operand 0, single buffered']
    #allocation9 [shape = 'u8[8192]{0}', space=vmem, size = 0x2000, scoped, tag = 'output window, operand 1, single buffered']
    #allocation10 [shape = 's32[1]{0}', space=sflag, size = 0x4, scoped, tag = 'scoped memory for tpu_custom_call.1']
    %10 = vsyncpa [#allocation3], 0
    %11 = vsyncpa [#allocation6], 0
    %12 = vsyncpa [#allocation4], 0
    %13 = vsyncpa [#allocation10], 0
    // Predicated region
    $region2: #{tpu_custom_call.1} parent=1 // pred_check
      _
    $region3: #{tpu_custom_call.1} parent=1 // pred_check_branch
      %15 = sbr.rel (0) target = $region5
    $region4: #{tpu_custom_call.1} parent=1 // pred_region
      %s17 = ssub.s32 512, 512
      %18 = vsyncadd [#allocation3], %s17
      %s20 = sshll.u32 [#allocation2], 4
      %s21 = int_to_ptr.vmem [resolvable:$true] %s20
      %23 = dma.hbm_to_vmem [thread:$0]  %s0, 512, %s21, [#allocation3]
    $region5: #{tpu_custom_call.1} parent=1 // pred_fallthru
      _
    // Predicated region
    $region6: #{tpu_custom_call.1} parent=1 // pred_check
      _
    $region7: #{tpu_custom_call.1} parent=1 // pred_check_branch
      %25 = sbr.rel (0) target = $region9
    $region8: #{tpu_custom_call.1} parent=1 // pred_region
      %s27 = ssub.s32 1024, 1024
      %28 = vsyncadd [#allocation6], %s27
      %s29 = sshll.u32 [#allocation5], 4
      %s30 = int_to_ptr.vmem [resolvable:$true] %s29
      %35 = dma.hbm_to_vmem [thread:$0]  %s1, 1024, %s30, [#allocation6], 512, 512, 32
    $region9: #{tpu_custom_call.1} parent=1 // pred_fallthru
      _
    // Predicated region
    $region10: #{tpu_custom_call.1} parent=1 // pred_check
      _
    $region11: #{tpu_custom_call.1} parent=1 // pred_check_branch
      %37 = sbr.rel (0) target = $region13
    $region12: #{tpu_custom_call.1} parent=1 // pred_region
      %s39 = ssub.s32 384, 384
      %40 = vsyncadd [#allocation6], %s39
      %s41 = sshll.u32 [#allocation7], 4
      %s42 = int_to_ptr.vmem [resolvable:$true] %s41
      %47 = dma.hbm_to_vmem [thread:$0]  %s2, 384, %s42, [#allocation6], 128, 128, 8
    $region13: #{tpu_custom_call.1} parent=1 // pred_fallthru
      _
    // Predicated region
    $region14: #{tpu_custom_call.1} parent=1 // pred_check
      _
    $region15: #{tpu_custom_call.1} parent=1 // pred_check_branch
      %49 = sbr.rel (0) target = $region17
    $region16: #{tpu_custom_call.1} parent=1 // pred_region
      %50 = dma.done [#allocation3], 512
    $region17: #{tpu_custom_call.1} parent=1 // pred_fallthru
      _
    // Predicated region
    $region18: #{tpu_custom_call.1} parent=1 // pred_check
      _
    $region19: #{tpu_custom_call.1} parent=1 // pred_check_branch
      %52 = sbr.rel (0) target = $region21
    $region20: #{tpu_custom_call.1} parent=1 // pred_region
      %53 = dma.done [#allocation6], 1024
    $region21: #{tpu_custom_call.1} parent=1 // pred_fallthru
      _
    // Predicated region
    $region22: #{tpu_custom_call.1} parent=1 // pred_check
      _
    $region23: #{tpu_custom_call.1} parent=1 // pred_check_branch
      %55 = sbr.rel (0) target = $region25
    $region24: #{tpu_custom_call.1} parent=1 // pred_region
      %56 = dma.done [#allocation6], 384
    $region25: #{tpu_custom_call.1} parent=1 // pred_fallthru
      _
    %v57 = vld [vmem:[#allocation2] sm:$0xff]
    %v58 = vld [vmem:[#allocation2 + $0x8] sm:$0xff]
    %v59 = vld [vmem:[#allocation2 + $0x10] sm:$0xff]
    %v60 = vld [vmem:[#allocation2 + $0x18] sm:$0xff]
    %v61 = vlaneseq
    %v62 = vshrl.u32 %v61, 7
    %vm63 = vcmp.eq.s32.totalorder %v62, 0
    %v64 = vsel %vm63, 1, 0
    %v65 = vcvt.s32.f32 %v64
    %v66 = vld [vmem:[#allocation7] sm:$0xff]
    %67 = vrot.lane.b32.xlu0 %v57, 17
    %v68 = vpop.permute.xlu0 %67
    %69 = vrot.lane.b32.xlu0 %v58, 17
    %v70 = vpop.permute.xlu0 %69
    %71 = vrot.lane.b32.xlu0 %v59, 17
    %v72 = vpop.permute.xlu0 %71
    %73 = vrot.lane.b32.xlu0 %v60, 17
    %v74 = vpop.permute.xlu0 %73
    %v75 = vlaneseq
    %v76 = vand.u32 %v75, 127
    %vm77 = vcmp.lt.s32.totalorder %v76, 17
    %v78 = vsel %vm77, %v72, %v74
    %v79 = vsel %vm77, %v70, %v72
    %v80 = vsel %vm77, %v68, %v70
    %v81 = vsel %vm77, %v74, %v68
    %v82 = vld [vmem:[#allocation5] ss:$8 sm:$0xf]
    %v84 = vlaneseq
    %v85 = vshrl.u32 %v84, 7
    %v86 = vsub.s32 0, %v85
    %v87 = vrot.slane %v82, %v86
    %v88 = vlaneseq
    %v89 = vshrl.u32 %v88, 7
    %v90 = vsub.s32 1, %v89
    %v91 = vrot.slane %v82, %v90
    %v92 = vlaneseq
    %v93 = vshrl.u32 %v92, 7
    %v94 = vsub.s32 2, %v93
    %v95 = vrot.slane %v82, %v94
    %v96 = vlaneseq
    %v97 = vshrl.u32 %v96, 7
    %v98 = vsub.s32 3, %v97
    %v99 = vrot.slane %v82, %v98
    %v104 = vmul.f32 %v81, %v87
    %v105 = vmul.f32 %v80, %v91
    %v106 = vmul.f32 %v79, %v95
    %v107 = vmul.f32 %v78, %v99
    %108 = vrot.lane.b32.xlu0 %v57, 16
    %v109 = vpop.permute.xlu0 %108
    %110 = vrot.lane.b32.xlu0 %v58, 16
    %v111 = vpop.permute.xlu0 %110
    %112 = vrot.lane.b32.xlu0 %v59, 16
    %v113 = vpop.permute.xlu0 %112
    %114 = vrot.lane.b32.xlu0 %v60, 16
    %v115 = vpop.permute.xlu0 %114
    %vm116 = vcmp.lt.s32.totalorder %v76, 16
    %v117 = vsel %vm116, %v113, %v115
    %v118 = vsel %vm116, %v111, %v113
    %v119 = vsel %vm116, %v109, %v111
    %v120 = vsel %vm116, %v115, %v109
    %s121 = scalar_lea.vmem [#allocation5], 1
    %v122 = vld [vmem:[%s121] ss:$8 sm:$0xf]
    %v124 = vlaneseq
    %v125 = vshrl.u32 %v124, 7
    %v126 = vsub.s32 0, %v125
    %v127 = vrot.slane %v122, %v126
    %v128 = vlaneseq
    %v129 = vshrl.u32 %v128, 7
    %v130 = vsub.s32 1, %v129
    %v131 = vrot.slane %v122, %v130
    %v132 = vlaneseq
    %v133 = vshrl.u32 %v132, 7
    %v134 = vsub.s32 2, %v133
    %v135 = vrot.slane %v122, %v134
    %v136 = vlaneseq
    %v137 = vshrl.u32 %v136, 7
    %v138 = vsub.s32 3, %v137
    %v139 = vrot.slane %v122, %v138
    %v144 = vmul.f32 %v120, %v127
    %v145 = vmul.f32 %v119, %v131
    %v146 = vmul.f32 %v118, %v135
    %v147 = vmul.f32 %v117, %v139
    %148 = vrot.lane.b32.xlu0 %v57, 15
    %v149 = vpop.permute.xlu0 %148
    %150 = vrot.lane.b32.xlu0 %v58, 15
    %v151 = vpop.permute.xlu0 %150
    %152 = vrot.lane.b32.xlu0 %v59, 15
    %v153 = vpop.permute.xlu0 %152
    %154 = vrot.lane.b32.xlu0 %v60, 15
    %v155 = vpop.permute.xlu0 %154
    %vm156 = vcmp.lt.s32.totalorder %v76, 15
    %v157 = vsel %vm156, %v153, %v155
    %v158 = vsel %vm156, %v151, %v153
    %v159 = vsel %vm156, %v149, %v151
    %v160 = vsel %vm156, %v155, %v149
    %s161 = scalar_lea.vmem [#allocation5], 2
    %v162 = vld [vmem:[%s161] ss:$8 sm:$0xf]
    %v164 = vlaneseq
    %v165 = vshrl.u32 %v164, 7
    %v166 = vsub.s32 0, %v165
    %v167 = vrot.slane %v162, %v166
    %v168 = vlaneseq
    %v169 = vshrl.u32 %v168, 7
    %v170 = vsub.s32 1, %v169
    %v171 = vrot.slane %v162, %v170
    %v172 = vlaneseq
    %v173 = vshrl.u32 %v172, 7
    %v174 = vsub.s32 2, %v173
    %v175 = vrot.slane %v162, %v174
    %v176 = vlaneseq
    %v177 = vshrl.u32 %v176, 7
    %v178 = vsub.s32 3, %v177
    %v179 = vrot.slane %v162, %v178
    %v184 = vmul.f32 %v160, %v167
    %v185 = vmul.f32 %v159, %v171
    %v186 = vmul.f32 %v158, %v175
    %v187 = vmul.f32 %v157, %v179
    %188 = vrot.lane.b32.xlu0 %v57, 1
    %v189 = vpop.permute.xlu0 %188
    %190 = vrot.lane.b32.xlu0 %v58, 1
    %v191 = vpop.permute.xlu0 %190
    %192 = vrot.lane.b32.xlu0 %v59, 1
    %v193 = vpop.permute.xlu0 %192
    %194 = vrot.lane.b32.xlu0 %v60, 1
    %v195 = vpop.permute.xlu0 %194
    %vm196 = vcmp.lt.s32.totalorder %v76, 1
    %v197 = vsel %vm196, %v193, %v195
    %v198 = vsel %vm196, %v191, %v193
    %v199 = vsel %vm196, %v189, %v191
    %v200 = vsel %vm196, %v195, %v189
    %s201 = scalar_lea.vmem [#allocation5], 3
    %v202 = vld [vmem:[%s201] ss:$8 sm:$0xf]
    %v204 = vlaneseq
    %v205 = vshrl.u32 %v204, 7
    %v206 = vsub.s32 0, %v205
    %v207 = vrot.slane %v202, %v206
    %v208 = vlaneseq
    %v209 = vshrl.u32 %v208, 7
    %v210 = vsub.s32 1, %v209
    %v211 = vrot.slane %v202, %v210
    %v212 = vlaneseq
    %v213 = vshrl.u32 %v212, 7
    %v214 = vsub.s32 2, %v213
    %v215 = vrot.slane %v202, %v214
    %v216 = vlaneseq
    %v217 = vshrl.u32 %v216, 7
    %v218 = vsub.s32 3, %v217
    %v219 = vrot.slane %v202, %v218
    %v224 = vmul.f32 %v200, %v207
    %v225 = vmul.f32 %v199, %v211
    %v226 = vmul.f32 %v198, %v215
    %v227 = vmul.f32 %v197, %v219
    %228 = vrot.lane.b32.xlu0 %v57, 127
    %v229 = vpop.permute.xlu0 %228
    %230 = vrot.lane.b32.xlu0 %v58, 127
    %v231 = vpop.permute.xlu0 %230
    %232 = vrot.lane.b32.xlu0 %v59, 127
    %v233 = vpop.permute.xlu0 %232
    %234 = vrot.lane.b32.xlu0 %v60, 127
    %v235 = vpop.permute.xlu0 %234
    %vm236 = vcmp.lt.s32.totalorder %v76, 127
    %v237 = vsel %vm236, %v233, %v235
    %v238 = vsel %vm236, %v231, %v233
    %v239 = vsel %vm236, %v229, %v231
    %v240 = vsel %vm236, %v235, %v229
    %s241 = scalar_lea.vmem [#allocation5], 5
    %v242 = vld [vmem:[%s241] ss:$8 sm:$0xf]
    %v244 = vlaneseq
    %v245 = vshrl.u32 %v244, 7
    %v246 = vsub.s32 0, %v245
    %v247 = vrot.slane %v242, %v246
    %v248 = vlaneseq
    %v249 = vshrl.u32 %v248, 7
    %v250 = vsub.s32 1, %v249
    %v251 = vrot.slane %v242, %v250
    %v252 = vlaneseq
    %v253 = vshrl.u32 %v252, 7
    %v254 = vsub.s32 2, %v253
    %v255 = vrot.slane %v242, %v254
    %v256 = vlaneseq
    %v257 = vshrl.u32 %v256, 7
    %v258 = vsub.s32 3, %v257
    %v259 = vrot.slane %v242, %v258
    %v264 = vmul.f32 %v239, %v247
    %v265 = vmul.f32 %v238, %v251
    %v266 = vmul.f32 %v237, %v255
    %v267 = vmul.f32 %v240, %v259
    %268 = vrot.lane.b32.xlu0 %v57, 113
    %v269 = vpop.permute.xlu0 %268
    %270 = vrot.lane.b32.xlu0 %v58, 113
    %v271 = vpop.permute.xlu0 %270
    %272 = vrot.lane.b32.xlu0 %v59, 113
    %v273 = vpop.permute.xlu0 %272
    %274 = vrot.lane.b32.xlu0 %v60, 113
    %v275 = vpop.permute.xlu0 %274
    %vm276 = vcmp.lt.s32.totalorder %v76, 113
    %v277 = vsel %vm276, %v273, %v275
    %v278 = vsel %vm276, %v271, %v273
    %v279 = vsel %vm276, %v269, %v271
    %v280 = vsel %vm276, %v275, %v269
    %s281 = scalar_lea.vmem [#allocation5], 6
    %v282 = vld [vmem:[%s281] ss:$8 sm:$0xf]
    %v284 = vlaneseq
    %v285 = vshrl.u32 %v284, 7
    %v286 = vsub.s32 0, %v285
    %v287 = vrot.slane %v282, %v286
    %v288 = vlaneseq
    %v289 = vshrl.u32 %v288, 7
    %v290 = vsub.s32 1, %v289
    %v291 = vrot.slane %v282, %v290
    %v292 = vlaneseq
    %v293 = vshrl.u32 %v292, 7
    %v294 = vsub.s32 2, %v293
    %v295 = vrot.slane %v282, %v294
    %v296 = vlaneseq
    %v297 = vshrl.u32 %v296, 7
    %v298 = vsub.s32 3, %v297
    %v299 = vrot.slane %v282, %v298
    %v304 = vmul.f32 %v279, %v287
    %v305 = vmul.f32 %v278, %v291
    %v306 = vmul.f32 %v277, %v295
    %v307 = vmul.f32 %v280, %v299
    %308 = vrot.lane.b32.xlu0 %v57, 112
    %v309 = vpop.permute.xlu0 %308
    %310 = vrot.lane.b32.xlu0 %v58, 112
    %v311 = vpop.permute.xlu0 %310
    %312 = vrot.lane.b32.xlu0 %v59, 112
    %v313 = vpop.permute.xlu0 %312
    %314 = vrot.lane.b32.xlu0 %v60, 112
    %v315 = vpop.permute.xlu0 %314
    %vm316 = vcmp.lt.s32.totalorder %v76, 112
    %v317 = vsel %vm316, %v313, %v315
    %v318 = vsel %vm316, %v311, %v313
    %v319 = vsel %vm316, %v309, %v311
    %v320 = vsel %vm316, %v315, %v309
    %s321 = scalar_lea.vmem [#allocation5], 7
    %v322 = vld [vmem:[%s321] ss:$8 sm:$0xf]
    %v324 = vlaneseq
    %v325 = vshrl.u32 %v324, 7
    %v326 = vsub.s32 0, %v325
    %v327 = vrot.slane %v322, %v326
    %v328 = vlaneseq
    %v329 = vshrl.u32 %v328, 7
    %v330 = vsub.s32 1, %v329
    %v331 = vrot.slane %v322, %v330
    %v332 = vlaneseq
    %v333 = vshrl.u32 %v332, 7
    %v334 = vsub.s32 2, %v333
    %v335 = vrot.slane %v322, %v334
    %v336 = vlaneseq
    %v337 = vshrl.u32 %v336, 7
    %v338 = vsub.s32 3, %v337
    %v339 = vrot.slane %v322, %v338
    %v344 = vmul.f32 %v319, %v327
    %v345 = vmul.f32 %v318, %v331
    %v346 = vmul.f32 %v317, %v335
    %v347 = vmul.f32 %v320, %v339
    %348 = vrot.lane.b32.xlu0 %v57, 111
    %v349 = vpop.permute.xlu0 %348
    %350 = vrot.lane.b32.xlu0 %v58, 111
    %v351 = vpop.permute.xlu0 %350
    %352 = vrot.lane.b32.xlu0 %v59, 111
    %v353 = vpop.permute.xlu0 %352
    %354 = vrot.lane.b32.xlu0 %v60, 111
    %v355 = vpop.permute.xlu0 %354
    %vm356 = vcmp.lt.s32.totalorder %v76, 111
    %v357 = vsel %vm356, %v353, %v355
    %v358 = vsel %vm356, %v351, %v353
    %v359 = vsel %vm356, %v349, %v351
    %v360 = vsel %vm356, %v355, %v349
    %s361 = scalar_lea.vmem [#allocation5], 32
    %v362 = vld [vmem:[%s361] ss:$8 sm:$0xf]
    %v364 = vlaneseq
    %v365 = vshrl.u32 %v364, 7
    %v366 = vsub.s32 0, %v365
    %v367 = vrot.slane %v362, %v366
    %v368 = vlaneseq
    %v369 = vshrl.u32 %v368, 7
    %v370 = vsub.s32 1, %v369
    %v371 = vrot.slane %v362, %v370
    %v372 = vlaneseq
    %v373 = vshrl.u32 %v372, 7
    %v374 = vsub.s32 2, %v373
    %v375 = vrot.slane %v362, %v374
    %v376 = vlaneseq
    %v377 = vshrl.u32 %v376, 7
    %v378 = vsub.s32 3, %v377
    %v379 = vrot.slane %v362, %v378
    %v384 = vmul.f32 %v359, %v367
    %v385 = vmul.f32 %v358, %v371
    %v386 = vmul.f32 %v357, %v375
    %v387 = vmul.f32 %v360, %v379
    %vm388 = vcmask 654336
    %v390 = vsel %vm388, %v66, 0
    %392 = vmatprep.subr.mxu0 0.0
    %393 = vmatpush1.msra.mxu0 0.0
    %394 = vmatprep.subr.mxu0 0.0
    %395 = vmatpush1.msra.mxu0 0.0
    %396 = vmatprep.subr.mxu0 0.0
    %397 = vmatpush1.msra.mxu0 0.0
    %398 = vmatprep.subr.mxu0 0.0
    %399 = vmatpush1.msra.mxu0 0.0
    %400 = vmatprep.subr.mxu0 0.0
    %401 = vmatpush1.msra.mxu0 0.0
    %402 = vmatprep.subr.mxu0 0.0
    %403 = vmatpush1.msra.mxu0 0.0
    %404 = vmatprep.subr.mxu0 %v65
    %405 = vmatpush1.msra.mxu0 %v65
    %406 = vmatprep.subr.mxu0 %v385
    %407 = vmatpush1.msra.mxu0 %v384
    %408 = vmatprep.subr.mxu0 %v345
    %409 = vmatpush1.msra.mxu0 %v344
    %410 = vmatprep.subr.mxu0 %v305
    %411 = vmatpush1.msra.mxu0 %v304
    %412 = vmatprep.subr.mxu0 %v265
    %413 = vmatpush1.msra.mxu0 %v264
    %414 = vmatprep.subr.mxu0 %v58
    %415 = vmatpush1.msra.mxu0 %v57
    %416 = vmatprep.subr.mxu0 %v225
    %417 = vmatpush1.msra.mxu0 %v224
    %418 = vmatprep.subr.mxu0 %v185
    %419 = vmatpush1.msra.mxu0 %v184
    %420 = vmatprep.subr.mxu0 %v145
    %421 = vmatpush1.msra.mxu0 %v144
    %422 = vmatprep.subr.mxu0 %v105
    %423 = vmatpush1.msra.mxu0 %v104
    %424 = vmatprep.subr.mxu0 0.0
    %425 = vmatpush2.msra.mxu0 0.0
    %426 = vmatprep.subr.mxu0 0.0
    %427 = vmatpush2.msra.mxu0 0.0
    %428 = vmatprep.subr.mxu0 0.0
    %429 = vmatpush2.msra.mxu0 0.0
    %430 = vmatprep.subr.mxu0 0.0
    %431 = vmatpush2.msra.mxu0 0.0
    %432 = vmatprep.subr.mxu0 0.0
    %433 = vmatpush2.msra.mxu0 0.0
    %434 = vmatprep.subr.mxu0 0.0
    %435 = vmatpush2.msra.mxu0 0.0
    %436 = vmatprep.subr.mxu0 0.0
    %437 = vmatpush2.msra.mxu0 0.0
    %438 = vmatprep.subr.mxu0 0.0
    %439 = vmatpush2.msra.mxu0 0.0
    %440 = vmatprep.subr.mxu0 0.0
    %441 = vmatpush2.msra.mxu0 0.0
    %442 = vmatprep.subr.mxu0 0.0
    %443 = vmatpush2.msra.mxu0 0.0
    %444 = vmatprep.subr.mxu0 0.0
    %445 = vmatpush2.msra.mxu0 0.0
    %446 = vmatprep.subr.mxu0 0.0
    %447 = vmatpush2.msra.mxu0 0.0
    %448 = vmatprep.subr.mxu0 0.0
    %449 = vmatpush2.msra.mxu0 0.0
    %450 = vmatprep.subr.mxu0 0.0
    %451 = vmatpush2.msra.mxu0 0.0
    %452 = vmatprep.subr.mxu0 0.0
    %453 = vmatpush2.msra.mxu0 0.0
    %454 = vmatprep.subr.mxu0 0.0
    %455 = vmatpush2.msra.mxu0 0.0
    %456 = vmatprep.mubr.f32.mxu0 0.0
    %457 = vmatmul.mubr.f32.gmra.mxu0 %v390
    %v458 = vpop.f32.mrf.mxu0
    %v459 = vadd.f32 0.0, %v458
    %v460 = vpop.f32.mrf.mxu0
    %v461 = vadd.f32 0.0, %v460
    %462 = vdwg.mxu0
    %463 = vmatprep.subr.mxu0 0.0
    %464 = vmatpush1.msra.mxu0 0.0
    %465 = vmatprep.subr.mxu0 0.0
    %466 = vmatpush1.msra.mxu0 0.0
    %467 = vmatprep.subr.mxu0 0.0
    %468 = vmatpush1.msra.mxu0 0.0
    %469 = vmatprep.subr.mxu0 0.0
    %470 = vmatpush1.msra.mxu0 0.0
    %471 = vmatprep.subr.mxu0 0.0
    %472 = vmatpush1.msra.mxu0 0.0
    %473 = vmatprep.subr.mxu0 0.0
    %474 = vmatpush1.msra.mxu0 0.0
    %475 = vmatprep.subr.mxu0 %v65
    %476 = vmatpush1.msra.mxu0 %v65
    %477 = vmatprep.subr.mxu0 %v387
    %478 = vmatpush1.msra.mxu0 %v386
    %479 = vmatprep.subr.mxu0 %v347
    %480 = vmatpush1.msra.mxu0 %v346
    %481 = vmatprep.subr.mxu0 %v307
    %482 = vmatpush1.msra.mxu0 %v306
    %483 = vmatprep.subr.mxu0 %v267
    %484 = vmatpush1.msra.mxu0 %v266
    %485 = vmatprep.subr.mxu0 %v60
    %486 = vmatpush1.msra.mxu0 %v59
    %487 = vmatprep.subr.mxu0 %v227
    %488 = vmatpush1.msra.mxu0 %v226
    %489 = vmatprep.subr.mxu0 %v187
    %490 = vmatpush1.msra.mxu0 %v186
    %491 = vmatprep.subr.mxu0 %v147
    %492 = vmatpush1.msra.mxu0 %v146
    %493 = vmatprep.subr.mxu0 %v107
    %494 = vmatpush1.msra.mxu0 %v106
    %495 = vmatprep.subr.mxu0 0.0
    %496 = vmatpush2.msra.mxu0 0.0
    %497 = vmatprep.subr.mxu0 0.0
    %498 = vmatpush2.msra.mxu0 0.0
    %499 = vmatprep.subr.mxu0 0.0
    %500 = vmatpush2.msra.mxu0 0.0
    %501 = vmatprep.subr.mxu0 0.0
    %502 = vmatpush2.msra.mxu0 0.0
    %503 = vmatprep.subr.mxu0 0.0
    %504 = vmatpush2.msra.mxu0 0.0
    %505 = vmatprep.subr.mxu0 0.0
    %506 = vmatpush2.msra.mxu0 0.0
    %507 = vmatprep.subr.mxu0 0.0
    %508 = vmatpush2.msra.mxu0 0.0
    %509 = vmatprep.subr.mxu0 0.0
    %510 = vmatpush2.msra.mxu0 0.0
    %511 = vmatprep.subr.mxu0 0.0
    %512 = vmatpush2.msra.mxu0 0.0
    %513 = vmatprep.subr.mxu0 0.0
    %514 = vmatpush2.msra.mxu0 0.0
    %515 = vmatprep.subr.mxu0 0.0
    %516 = vmatpush2.msra.mxu0 0.0
    %517 = vmatprep.subr.mxu0 0.0
    %518 = vmatpush2.msra.mxu0 0.0
    %519 = vmatprep.subr.mxu0 0.0
    %520 = vmatpush2.msra.mxu0 0.0
    %521 = vmatprep.subr.mxu0 0.0
    %522 = vmatpush2.msra.mxu0 0.0
    %523 = vmatprep.subr.mxu0 0.0
    %524 = vmatpush2.msra.mxu0 0.0
    %525 = vmatprep.subr.mxu0 0.0
    %526 = vmatpush2.msra.mxu0 0.0
    %527 = vmatprep.mubr.f32.mxu0 0.0
    %528 = vmatmul.mubr.f32.gmra.mxu0 %v390
    %v529 = vpop.f32.mrf.mxu0
    %v530 = vadd.f32 0.0, %v529
    %v531 = vpop.f32.mrf.mxu0
    %v532 = vadd.f32 0.0, %v531
    %533 = vdwg.mxu0
    %v534 = vmax.f32 %v459, 0.0
    %v535 = vmax.f32 %v461, 0.0
    %v536 = vmax.f32 %v530, 0.0
    %v537 = vmax.f32 %v532, 0.0
    %v538 = vld [vmem:[#allocation7 + $0x8] sm:$0xff]
    %539 = vrot.lane.b32.xlu0 %v534, 17
    %v540 = vpop.permute.xlu0 %539
    %541 = vrot.lane.b32.xlu0 %v535, 17
    %v542 = vpop.permute.xlu0 %541
    %543 = vrot.lane.b32.xlu0 %v536, 17
    %v544 = vpop.permute.xlu0 %543
    %545 = vrot.lane.b32.xlu0 %v537, 17
    %v546 = vpop.permute.xlu0 %545
    %v547 = vsel %vm77, %v544, %v546
    %v548 = vsel %vm77, %v542, %v544
    %v549 = vsel %vm77, %v540, %v542
    %v550 = vsel %vm77, %v546, %v540
    %v551 = vmul.f32 %v550, %v87
    %v552 = vmul.f32 %v549, %v91
    %v553 = vmul.f32 %v548, %v95
    %v554 = vmul.f32 %v547, %v99
    %555 = vrot.lane.b32.xlu0 %v534, 16
    %v556 = vpop.permute.xlu0 %555
    %557 = vrot.lane.b32.xlu0 %v535, 16
    %v558 = vpop.permute.xlu0 %557
    %559 = vrot.lane.b32.xlu0 %v536, 16
    %v560 = vpop.permute.xlu0 %559
    %561 = vrot.lane.b32.xlu0 %v537, 16
    %v562 = vpop.permute.xlu0 %561
    %v563 = vsel %vm116, %v560, %v562
    %v564 = vsel %vm116, %v558, %v560
    %v565 = vsel %vm116, %v556, %v558
    %v566 = vsel %vm116, %v562, %v556
    %v567 = vmul.f32 %v566, %v127
    %v568 = vmul.f32 %v565, %v131
    %v569 = vmul.f32 %v564, %v135
    %v570 = vmul.f32 %v563, %v139
    %571 = vrot.lane.b32.xlu0 %v534, 15
    %v572 = vpop.permute.xlu0 %571
    %573 = vrot.lane.b32.xlu0 %v535, 15
    %v574 = vpop.permute.xlu0 %573
    %575 = vrot.lane.b32.xlu0 %v536, 15
    %v576 = vpop.permute.xlu0 %575
    %577 = vrot.lane.b32.xlu0 %v537, 15
    %v578 = vpop.permute.xlu0 %577
    %v579 = vsel %vm156, %v576, %v578
    %v580 = vsel %vm156, %v574, %v576
    %v581 = vsel %vm156, %v572, %v574
    %v582 = vsel %vm156, %v578, %v572
    %v583 = vmul.f32 %v582, %v167
    %v584 = vmul.f32 %v581, %v171
    %v585 = vmul.f32 %v580, %v175
    %v586 = vmul.f32 %v579, %v179
    %587 = vrot.lane.b32.xlu0 %v534, 1
    %v588 = vpop.permute.xlu0 %587
    %589 = vrot.lane.b32.xlu0 %v535, 1
    %v590 = vpop.permute.xlu0 %589
    %591 = vrot.lane.b32.xlu0 %v536, 1
    %v592 = vpop.permute.xlu0 %591
    %593 = vrot.lane.b32.xlu0 %v537, 1
    %v594 = vpop.permute.xlu0 %593
    %v595 = vsel %vm196, %v592, %v594
    %v596 = vsel %vm196, %v590, %v592
    %v597 = vsel %vm196, %v588, %v590
    %v598 = vsel %vm196, %v594, %v588
    %v599 = vmul.f32 %v598, %v207
    %v600 = vmul.f32 %v597, %v211
    %v601 = vmul.f32 %v596, %v215
    %v602 = vmul.f32 %v595, %v219
    %603 = vrot.lane.b32.xlu0 %v534, 127
    %v604 = vpop.permute.xlu0 %603
    %605 = vrot.lane.b32.xlu0 %v535, 127
    %v606 = vpop.permute.xlu0 %605
    %607 = vrot.lane.b32.xlu0 %v536, 127
    %v608 = vpop.permute.xlu0 %607
    %609 = vrot.lane.b32.xlu0 %v537, 127
    %v610 = vpop.permute.xlu0 %609
    %v611 = vsel %vm236, %v608, %v610
    %v612 = vsel %vm236, %v606, %v608
    %v613 = vsel %vm236, %v604, %v606
    %v614 = vsel %vm236, %v610, %v604
    %v615 = vmul.f32 %v613, %v247
    %v616 = vmul.f32 %v612, %v251
    %v617 = vmul.f32 %v611, %v255
    %v618 = vmul.f32 %v614, %v259
    %619 = vrot.lane.b32.xlu0 %v534, 113
    %v620 = vpop.permute.xlu0 %619
    %621 = vrot.lane.b32.xlu0 %v535, 113
    %v622 = vpop.permute.xlu0 %621
    %623 = vrot.lane.b32.xlu0 %v536, 113
    %v624 = vpop.permute.xlu0 %623
    %625 = vrot.lane.b32.xlu0 %v537, 113
    %v626 = vpop.permute.xlu0 %625
    %v627 = vsel %vm276, %v624, %v626
    %v628 = vsel %vm276, %v622, %v624
    %v629 = vsel %vm276, %v620, %v622
    %v630 = vsel %vm276, %v626, %v620
    %v631 = vmul.f32 %v629, %v287
    %v632 = vmul.f32 %v628, %v291
    %v633 = vmul.f32 %v627, %v295
    %v634 = vmul.f32 %v630, %v299
    %635 = vrot.lane.b32.xlu0 %v534, 112
    %v636 = vpop.permute.xlu0 %635
    %637 = vrot.lane.b32.xlu0 %v535, 112
    %v638 = vpop.permute.xlu0 %637
    %639 = vrot.lane.b32.xlu0 %v536, 112
    %v640 = vpop.permute.xlu0 %639
    %641 = vrot.lane.b32.xlu0 %v537, 112
    %v642 = vpop.permute.xlu0 %641
    %v643 = vsel %vm316, %v640, %v642
    %v644 = vsel %vm316, %v638, %v640
    %v645 = vsel %vm316, %v636, %v638
    %v646 = vsel %vm316, %v642, %v636
    %v647 = vmul.f32 %v645, %v327
    %v648 = vmul.f32 %v644, %v331
    %v649 = vmul.f32 %v643, %v335
    %v650 = vmul.f32 %v646, %v339
    %651 = vrot.lane.b32.xlu0 %v534, 111
    %v652 = vpop.permute.xlu0 %651
    %653 = vrot.lane.b32.xlu0 %v535, 111
    %v654 = vpop.permute.xlu0 %653
    %655 = vrot.lane.b32.xlu0 %v536, 111
    %v656 = vpop.permute.xlu0 %655
    %657 = vrot.lane.b32.xlu0 %v537, 111
    %v658 = vpop.permute.xlu0 %657
    %v659 = vsel %vm356, %v656, %v658
    %v660 = vsel %vm356, %v654, %v656
    %v661 = vsel %vm356, %v652, %v654
    %v662 = vsel %vm356, %v658, %v652
    %v663 = vmul.f32 %v661, %v367
    %v664 = vmul.f32 %v660, %v371
    %v665 = vmul.f32 %v659, %v375
    %v666 = vmul.f32 %v662, %v379
    %v668 = vsel %vm388, %v538, 0
    %670 = vmatprep.subr.mxu0 0.0
    %671 = vmatpush1.msra.mxu0 0.0
    %672 = vmatprep.subr.mxu0 0.0
    %673 = vmatpush1.msra.mxu0 0.0
    %674 = vmatprep.subr.mxu0 0.0
    %675 = vmatpush1.msra.mxu0 0.0
    %676 = vmatprep.subr.mxu0 0.0
    %677 = vmatpush1.msra.mxu0 0.0
    %678 = vmatprep.subr.mxu0 0.0
    %679 = vmatpush1.msra.mxu0 0.0
    %680 = vmatprep.subr.mxu0 0.0
    %681 = vmatpush1.msra.mxu0 0.0
    %682 = vmatprep.subr.mxu0 %v65
    %683 = vmatpush1.msra.mxu0 %v65
    %684 = vmatprep.subr.mxu0 %v664
    %685 = vmatpush1.msra.mxu0 %v663
    %686 = vmatprep.subr.mxu0 %v648
    %687 = vmatpush1.msra.mxu0 %v647
    %688 = vmatprep.subr.mxu0 %v632
    %689 = vmatpush1.msra.mxu0 %v631
    %690 = vmatprep.subr.mxu0 %v616
    %691 = vmatpush1.msra.mxu0 %v615
    %692 = vmatprep.subr.mxu0 %v535
    %693 = vmatpush1.msra.mxu0 %v534
    %694 = vmatprep.subr.mxu0 %v600
    %695 = vmatpush1.msra.mxu0 %v599
    %696 = vmatprep.subr.mxu0 %v584
    %697 = vmatpush1.msra.mxu0 %v583
    %698 = vmatprep.subr.mxu0 %v568
    %699 = vmatpush1.msra.mxu0 %v567
    %700 = vmatprep.subr.mxu0 %v552
    %701 = vmatpush1.msra.mxu0 %v551
    %702 = vmatprep.subr.mxu0 0.0
    %703 = vmatpush2.msra.mxu0 0.0
    %704 = vmatprep.subr.mxu0 0.0
    %705 = vmatpush2.msra.mxu0 0.0
    %706 = vmatprep.subr.mxu0 0.0
    %707 = vmatpush2.msra.mxu0 0.0
    %708 = vmatprep.subr.mxu0 0.0
    %709 = vmatpush2.msra.mxu0 0.0
    %710 = vmatprep.subr.mxu0 0.0
    %711 = vmatpush2.msra.mxu0 0.0
    %712 = vmatprep.subr.mxu0 0.0
    %713 = vmatpush2.msra.mxu0 0.0
    %714 = vmatprep.subr.mxu0 0.0
    %715 = vmatpush2.msra.mxu0 0.0
    %716 = vmatprep.subr.mxu0 0.0
    %717 = vmatpush2.msra.mxu0 0.0
    %718 = vmatprep.subr.mxu0 0.0
    %719 = vmatpush2.msra.mxu0 0.0
    %720 = vmatprep.subr.mxu0 0.0
    %721 = vmatpush2.msra.mxu0 0.0
    %722 = vmatprep.subr.mxu0 0.0
    %723 = vmatpush2.msra.mxu0 0.0
    %724 = vmatprep.subr.mxu0 0.0
    %725 = vmatpush2.msra.mxu0 0.0
    %726 = vmatprep.subr.mxu0 0.0
    %727 = vmatpush2.msra.mxu0 0.0
    %728 = vmatprep.subr.mxu0 0.0
    %729 = vmatpush2.msra.mxu0 0.0
    %730 = vmatprep.subr.mxu0 0.0
    %731 = vmatpush2.msra.mxu0 0.0
    %732 = vmatprep.subr.mxu0 0.0
    %733 = vmatpush2.msra.mxu0 0.0
    %734 = vmatprep.mubr.f32.mxu0 0.0
    %735 = vmatmul.mubr.f32.gmra.mxu0 %v668
    %v736 = vpop.f32.mrf.mxu0
    %v737 = vadd.f32 0.0, %v736
    %v738 = vpop.f32.mrf.mxu0
    %v739 = vadd.f32 0.0, %v738
    %740 = vdwg.mxu0
    %741 = vmatprep.subr.mxu0 0.0
    %742 = vmatpush1.msra.mxu0 0.0
    %743 = vmatprep.subr.mxu0 0.0
    %744 = vmatpush1.msra.mxu0 0.0
    %745 = vmatprep.subr.mxu0 0.0
    %746 = vmatpush1.msra.mxu0 0.0
    %747 = vmatprep.subr.mxu0 0.0
    %748 = vmatpush1.msra.mxu0 0.0
    %749 = vmatprep.subr.mxu0 0.0
    %750 = vmatpush1.msra.mxu0 0.0
    %751 = vmatprep.subr.mxu0 0.0
    %752 = vmatpush1.msra.mxu0 0.0
    %753 = vmatprep.subr.mxu0 %v65
    %754 = vmatpush1.msra.mxu0 %v65
    %755 = vmatprep.subr.mxu0 %v666
    %756 = vmatpush1.msra.mxu0 %v665
    %757 = vmatprep.subr.mxu0 %v650
    %758 = vmatpush1.msra.mxu0 %v649
    %759 = vmatprep.subr.mxu0 %v634
    %760 = vmatpush1.msra.mxu0 %v633
    %761 = vmatprep.subr.mxu0 %v618
    %762 = vmatpush1.msra.mxu0 %v617
    %763 = vmatprep.subr.mxu0 %v537
    %764 = vmatpush1.msra.mxu0 %v536
    %765 = vmatprep.subr.mxu0 %v602
    %766 = vmatpush1.msra.mxu0 %v601
    %767 = vmatprep.subr.mxu0 %v586
    %768 = vmatpush1.msra.mxu0 %v585
    %769 = vmatprep.subr.mxu0 %v570
    %770 = vmatpush1.msra.mxu0 %v569
    %771 = vmatprep.subr.mxu0 %v554
    %772 = vmatpush1.msra.mxu0 %v553
    %773 = vmatprep.subr.mxu0 0.0
    %774 = vmatpush2.msra.mxu0 0.0
    %775 = vmatprep.subr.mxu0 0.0
    %776 = vmatpush2.msra.mxu0 0.0
    %777 = vmatprep.subr.mxu0 0.0
    %778 = vmatpush2.msra.mxu0 0.0
    %779 = vmatprep.subr.mxu0 0.0
    %780 = vmatpush2.msra.mxu0 0.0
    %781 = vmatprep.subr.mxu0 0.0
    %782 = vmatpush2.msra.mxu0 0.0
    %783 = vmatprep.subr.mxu0 0.0
    %784 = vmatpush2.msra.mxu0 0.0
    %785 = vmatprep.subr.mxu0 0.0
    %786 = vmatpush2.msra.mxu0 0.0
    %787 = vmatprep.subr.mxu0 0.0
    %788 = vmatpush2.msra.mxu0 0.0
    %789 = vmatprep.subr.mxu0 0.0
    %790 = vmatpush2.msra.mxu0 0.0
    %791 = vmatprep.subr.mxu0 0.0
    %792 = vmatpush2.msra.mxu0 0.0
    %793 = vmatprep.subr.mxu0 0.0
    %794 = vmatpush2.msra.mxu0 0.0
    %795 = vmatprep.subr.mxu0 0.0
    %796 = vmatpush2.msra.mxu0 0.0
    %797 = vmatprep.subr.mxu0 0.0
    %798 = vmatpush2.msra.mxu0 0.0
    %799 = vmatprep.subr.mxu0 0.0
    %800 = vmatpush2.msra.mxu0 0.0
    %801 = vmatprep.subr.mxu0 0.0
    %802 = vmatpush2.msra.mxu0 0.0
    %803 = vmatprep.subr.mxu0 0.0
    %804 = vmatpush2.msra.mxu0 0.0
    %805 = vmatprep.mubr.f32.mxu0 0.0
    %806 = vmatmul.mubr.f32.gmra.mxu0 %v668
    %v807 = vpop.f32.mrf.mxu0
    %v808 = vadd.f32 0.0, %v807
    %v809 = vpop.f32.mrf.mxu0
    %v810 = vadd.f32 0.0, %v809
    %811 = vdwg.mxu0
    %v812 = vmax.f32 %v737, 0.0
    %v813 = vmax.f32 %v739, 0.0
    %v814 = vmax.f32 %v808, 0.0
    %v815 = vmax.f32 %v810, 0.0
    %v816 = vadd.f32 %v534, %v812
    %v817 = vadd.f32 %v535, %v813
    %v818 = vadd.f32 %v536, %v814
    %v819 = vadd.f32 %v537, %v815
    %v820 = vld [vmem:[#allocation7 + $0x10] sm:$0xff]
    %821 = vrot.lane.b32.xlu0 %v816, 17
    %v822 = vpop.permute.xlu0 %821
    %823 = vrot.lane.b32.xlu0 %v817, 17
    %v824 = vpop.permute.xlu0 %823
    %825 = vrot.lane.b32.xlu0 %v818, 17
    %v826 = vpop.permute.xlu0 %825
    %827 = vrot.lane.b32.xlu0 %v819, 17
    %v828 = vpop.permute.xlu0 %827
    %v829 = vsel %vm77, %v826, %v828
    %v830 = vsel %vm77, %v824, %v826
    %v831 = vsel %vm77, %v822, %v824
    %v832 = vsel %vm77, %v828, %v822
    %v833 = vmul.f32 %v832, %v87
    %v834 = vmul.f32 %v831, %v91
    %v835 = vmul.f32 %v830, %v95
    %v836 = vmul.f32 %v829, %v99
    %837 = vrot.lane.b32.xlu0 %v816, 16
    %v838 = vpop.permute.xlu0 %837
    %839 = vrot.lane.b32.xlu0 %v817, 16
    %v840 = vpop.permute.xlu0 %839
    %841 = vrot.lane.b32.xlu0 %v818, 16
    %v842 = vpop.permute.xlu0 %841
    %843 = vrot.lane.b32.xlu0 %v819, 16
    %v844 = vpop.permute.xlu0 %843
    %v845 = vsel %vm116, %v842, %v844
    %v846 = vsel %vm116, %v840, %v842
    %v847 = vsel %vm116, %v838, %v840
    %v848 = vsel %vm116, %v844, %v838
    %v849 = vmul.f32 %v848, %v127
    %v850 = vmul.f32 %v847, %v131
    %v851 = vmul.f32 %v846, %v135
    %v852 = vmul.f32 %v845, %v139
    %853 = vrot.lane.b32.xlu0 %v816, 15
    %v854 = vpop.permute.xlu0 %853
    %855 = vrot.lane.b32.xlu0 %v817, 15
    %v856 = vpop.permute.xlu0 %855
    %857 = vrot.lane.b32.xlu0 %v818, 15
    %v858 = vpop.permute.xlu0 %857
    %859 = vrot.lane.b32.xlu0 %v819, 15
    %v860 = vpop.permute.xlu0 %859
    %v861 = vsel %vm156, %v858, %v860
    %v862 = vsel %vm156, %v856, %v858
    %v863 = vsel %vm156, %v854, %v856
    %v864 = vsel %vm156, %v860, %v854
    %v865 = vmul.f32 %v864, %v167
    %v866 = vmul.f32 %v863, %v171
    %v867 = vmul.f32 %v862, %v175
    %v868 = vmul.f32 %v861, %v179
    %869 = vrot.lane.b32.xlu0 %v816, 1
    %v870 = vpop.permute.xlu0 %869
    %871 = vrot.lane.b32.xlu0 %v817, 1
    %v872 = vpop.permute.xlu0 %871
    %873 = vrot.lane.b32.xlu0 %v818, 1
    %v874 = vpop.permute.xlu0 %873
    %875 = vrot.lane.b32.xlu0 %v819, 1
    %v876 = vpop.permute.xlu0 %875
    %v877 = vsel %vm196, %v874, %v876
    %v878 = vsel %vm196, %v872, %v874
    %v879 = vsel %vm196, %v870, %v872
    %v880 = vsel %vm196, %v876, %v870
    %v881 = vmul.f32 %v880, %v207
    %v882 = vmul.f32 %v879, %v211
    %v883 = vmul.f32 %v878, %v215
    %v884 = vmul.f32 %v877, %v219
    %885 = vrot.lane.b32.xlu0 %v816, 127
    %v886 = vpop.permute.xlu0 %885
    %887 = vrot.lane.b32.xlu0 %v817, 127
    %v888 = vpop.permute.xlu0 %887
    %889 = vrot.lane.b32.xlu0 %v818, 127
    %v890 = vpop.permute.xlu0 %889
    %891 = vrot.lane.b32.xlu0 %v819, 127
    %v892 = vpop.permute.xlu0 %891
    %v893 = vsel %vm236, %v890, %v892
    %v894 = vsel %vm236, %v888, %v890
    %v895 = vsel %vm236, %v886, %v888
    %v896 = vsel %vm236, %v892, %v886
    %v897 = vmul.f32 %v895, %v247
    %v898 = vmul.f32 %v894, %v251
    %v899 = vmul.f32 %v893, %v255
    %v900 = vmul.f32 %v896, %v259
    %901 = vrot.lane.b32.xlu0 %v816, 113
    %v902 = vpop.permute.xlu0 %901
    %903 = vrot.lane.b32.xlu0 %v817, 113
    %v904 = vpop.permute.xlu0 %903
    %905 = vrot.lane.b32.xlu0 %v818, 113
    %v906 = vpop.permute.xlu0 %905
    %907 = vrot.lane.b32.xlu0 %v819, 113
    %v908 = vpop.permute.xlu0 %907
    %v909 = vsel %vm276, %v906, %v908
    %v910 = vsel %vm276, %v904, %v906
    %v911 = vsel %vm276, %v902, %v904
    %v912 = vsel %vm276, %v908, %v902
    %v913 = vmul.f32 %v911, %v287
    %v914 = vmul.f32 %v910, %v291
    %v915 = vmul.f32 %v909, %v295
    %v916 = vmul.f32 %v912, %v299
    %917 = vrot.lane.b32.xlu0 %v816, 112
    %v918 = vpop.permute.xlu0 %917
    %919 = vrot.lane.b32.xlu0 %v817, 112
    %v920 = vpop.permute.xlu0 %919
    %921 = vrot.lane.b32.xlu0 %v818, 112
    %v922 = vpop.permute.xlu0 %921
    %923 = vrot.lane.b32.xlu0 %v819, 112
    %v924 = vpop.permute.xlu0 %923
    %v925 = vsel %vm316, %v922, %v924
    %v926 = vsel %vm316, %v920, %v922
    %v927 = vsel %vm316, %v918, %v920
    %v928 = vsel %vm316, %v924, %v918
    %v929 = vmul.f32 %v927, %v327
    %v930 = vmul.f32 %v926, %v331
    %v931 = vmul.f32 %v925, %v335
    %v932 = vmul.f32 %v928, %v339
    %933 = vrot.lane.b32.xlu0 %v816, 111
    %v934 = vpop.permute.xlu0 %933
    %935 = vrot.lane.b32.xlu0 %v817, 111
    %v936 = vpop.permute.xlu0 %935
    %937 = vrot.lane.b32.xlu0 %v818, 111
    %v938 = vpop.permute.xlu0 %937
    %939 = vrot.lane.b32.xlu0 %v819, 111
    %v940 = vpop.permute.xlu0 %939
    %v941 = vsel %vm356, %v938, %v940
    %v942 = vsel %vm356, %v936, %v938
    %v943 = vsel %vm356, %v934, %v936
    %v944 = vsel %vm356, %v940, %v934
    %v945 = vmul.f32 %v943, %v367
    %v946 = vmul.f32 %v942, %v371
    %v947 = vmul.f32 %v941, %v375
    %v948 = vmul.f32 %v944, %v379
    %v950 = vsel %vm388, %v820, 0
    %952 = vmatprep.subr.mxu0 0.0
    %953 = vmatpush1.msra.mxu0 0.0
    %954 = vmatprep.subr.mxu0 0.0
    %955 = vmatpush1.msra.mxu0 0.0
    %956 = vmatprep.subr.mxu0 0.0
    %957 = vmatpush1.msra.mxu0 0.0
    %958 = vmatprep.subr.mxu0 0.0
    %959 = vmatpush1.msra.mxu0 0.0
    %960 = vmatprep.subr.mxu0 0.0
    %961 = vmatpush1.msra.mxu0 0.0
    %962 = vmatprep.subr.mxu0 0.0
    %963 = vmatpush1.msra.mxu0 0.0
    %964 = vmatprep.subr.mxu0 %v65
    %965 = vmatpush1.msra.mxu0 %v65
    %966 = vmatprep.subr.mxu0 %v946
    %967 = vmatpush1.msra.mxu0 %v945
    %968 = vmatprep.subr.mxu0 %v930
    %969 = vmatpush1.msra.mxu0 %v929
    %970 = vmatprep.subr.mxu0 %v914
    %971 = vmatpush1.msra.mxu0 %v913
    %972 = vmatprep.subr.mxu0 %v898
    %973 = vmatpush1.msra.mxu0 %v897
    %974 = vmatprep.subr.mxu0 %v817
    %975 = vmatpush1.msra.mxu0 %v816
    %976 = vmatprep.subr.mxu0 %v882
    %977 = vmatpush1.msra.mxu0 %v881
    %978 = vmatprep.subr.mxu0 %v866
    %979 = vmatpush1.msra.mxu0 %v865
    %980 = vmatprep.subr.mxu0 %v850
    %981 = vmatpush1.msra.mxu0 %v849
    %982 = vmatprep.subr.mxu0 %v834
    %983 = vmatpush1.msra.mxu0 %v833
    %984 = vmatprep.subr.mxu0 0.0
    %985 = vmatpush2.msra.mxu0 0.0
    %986 = vmatprep.subr.mxu0 0.0
    %987 = vmatpush2.msra.mxu0 0.0
    %988 = vmatprep.subr.mxu0 0.0
    %989 = vmatpush2.msra.mxu0 0.0
    %990 = vmatprep.subr.mxu0 0.0
    %991 = vmatpush2.msra.mxu0 0.0
    %992 = vmatprep.subr.mxu0 0.0
    %993 = vmatpush2.msra.mxu0 0.0
    %994 = vmatprep.subr.mxu0 0.0
    %995 = vmatpush2.msra.mxu0 0.0
    %996 = vmatprep.subr.mxu0 0.0
    %997 = vmatpush2.msra.mxu0 0.0
    %998 = vmatprep.subr.mxu0 0.0
    %999 = vmatpush2.msra.mxu0 0.0
    %1000 = vmatprep.subr.mxu0 0.0
    %1001 = vmatpush2.msra.mxu0 0.0
    %1002 = vmatprep.subr.mxu0 0.0
    %1003 = vmatpush2.msra.mxu0 0.0
    %1004 = vmatprep.subr.mxu0 0.0
    %1005 = vmatpush2.msra.mxu0 0.0
    %1006 = vmatprep.subr.mxu0 0.0
    %1007 = vmatpush2.msra.mxu0 0.0
    %1008 = vmatprep.subr.mxu0 0.0
    %1009 = vmatpush2.msra.mxu0 0.0
    %1010 = vmatprep.subr.mxu0 0.0
    %1011 = vmatpush2.msra.mxu0 0.0
    %1012 = vmatprep.subr.mxu0 0.0
    %1013 = vmatpush2.msra.mxu0 0.0
    %1014 = vmatprep.subr.mxu0 0.0
    %1015 = vmatpush2.msra.mxu0 0.0
    %1016 = vmatprep.mubr.f32.mxu0 0.0
    %1017 = vmatmul.mubr.f32.gmra.mxu0 %v950
    %v1018 = vpop.f32.mrf.mxu0
    %v1019 = vadd.f32 0.0, %v1018
    %v1020 = vpop.f32.mrf.mxu0
    %v1021 = vadd.f32 0.0, %v1020
    %1022 = vdwg.mxu0
    %1023 = vmatprep.subr.mxu0 0.0
    %1024 = vmatpush1.msra.mxu0 0.0
    %1025 = vmatprep.subr.mxu0 0.0
    %1026 = vmatpush1.msra.mxu0 0.0
    %1027 = vmatprep.subr.mxu0 0.0
    %1028 = vmatpush1.msra.mxu0 0.0
    %1029 = vmatprep.subr.mxu0 0.0
    %1030 = vmatpush1.msra.mxu0 0.0
    %1031 = vmatprep.subr.mxu0 0.0
    %1032 = vmatpush1.msra.mxu0 0.0
    %1033 = vmatprep.subr.mxu0 0.0
    %1034 = vmatpush1.msra.mxu0 0.0
    %1035 = vmatprep.subr.mxu0 %v65
    %1036 = vmatpush1.msra.mxu0 %v65
    %1037 = vmatprep.subr.mxu0 %v948
    %1038 = vmatpush1.msra.mxu0 %v947
    %1039 = vmatprep.subr.mxu0 %v932
    %1040 = vmatpush1.msra.mxu0 %v931
    %1041 = vmatprep.subr.mxu0 %v916
    %1042 = vmatpush1.msra.mxu0 %v915
    %1043 = vmatprep.subr.mxu0 %v900
    %1044 = vmatpush1.msra.mxu0 %v899
    %1045 = vmatprep.subr.mxu0 %v819
    %1046 = vmatpush1.msra.mxu0 %v818
    %1047 = vmatprep.subr.mxu0 %v884
    %1048 = vmatpush1.msra.mxu0 %v883
    %1049 = vmatprep.subr.mxu0 %v868
    %1050 = vmatpush1.msra.mxu0 %v867
    %1051 = vmatprep.subr.mxu0 %v852
    %1052 = vmatpush1.msra.mxu0 %v851
    %1053 = vmatprep.subr.mxu0 %v836
    %1054 = vmatpush1.msra.mxu0 %v835
    %1055 = vmatprep.subr.mxu0 0.0
    %1056 = vmatpush2.msra.mxu0 0.0
    %1057 = vmatprep.subr.mxu0 0.0
    %1058 = vmatpush2.msra.mxu0 0.0
    %1059 = vmatprep.subr.mxu0 0.0
    %1060 = vmatpush2.msra.mxu0 0.0
    %1061 = vmatprep.subr.mxu0 0.0
    %1062 = vmatpush2.msra.mxu0 0.0
    %1063 = vmatprep.subr.mxu0 0.0
    %1064 = vmatpush2.msra.mxu0 0.0
    %1065 = vmatprep.subr.mxu0 0.0
    %1066 = vmatpush2.msra.mxu0 0.0
    %1067 = vmatprep.subr.mxu0 0.0
    %1068 = vmatpush2.msra.mxu0 0.0
    %1069 = vmatprep.subr.mxu0 0.0
    %1070 = vmatpush2.msra.mxu0 0.0
    %1071 = vmatprep.subr.mxu0 0.0
    %1072 = vmatpush2.msra.mxu0 0.0
    %1073 = vmatprep.subr.mxu0 0.0
    %1074 = vmatpush2.msra.mxu0 0.0
    %1075 = vmatprep.subr.mxu0 0.0
    %1076 = vmatpush2.msra.mxu0 0.0
    %1077 = vmatprep.subr.mxu0 0.0
    %1078 = vmatpush2.msra.mxu0 0.0
    %1079 = vmatprep.subr.mxu0 0.0
    %1080 = vmatpush2.msra.mxu0 0.0
    %1081 = vmatprep.subr.mxu0 0.0
    %1082 = vmatpush2.msra.mxu0 0.0
    %1083 = vmatprep.subr.mxu0 0.0
    %1084 = vmatpush2.msra.mxu0 0.0
    %1085 = vmatprep.subr.mxu0 0.0
    %1086 = vmatpush2.msra.mxu0 0.0
    %1087 = vmatprep.mubr.f32.mxu0 0.0
    %1088 = vmatmul.mubr.f32.gmra.mxu0 %v950
    %v1089 = vpop.f32.mrf.mxu0
    %v1090 = vadd.f32 0.0, %v1089
    %v1091 = vpop.f32.mrf.mxu0
    %v1092 = vadd.f32 0.0, %v1091
    %1093 = vdwg.mxu0
    %v1094 = vxor.u32 %v1019, 2147483648
    %v1095 = vxor.u32 %v1021, 2147483648
    %v1096 = vxor.u32 %v1090, 2147483648
    %v1097 = vxor.u32 %v1092, 2147483648
    %v1098 = vmul.f32 %v1094, 1.442695
    %v1099 = vpow.pop %v1098
    %v1100 = vmul.f32 %v1095, 1.442695
    %v1101 = vpow.pop %v1100
    %v1102 = vmul.f32 %v1096, 1.442695
    %v1103 = vpow.pop %v1102
    %v1104 = vmul.f32 %v1097, 1.442695
    %v1105 = vpow.pop %v1104
    %v1106 = vadd.f32 %v1099, 1.0
    %v1107 = vadd.f32 %v1101, 1.0
    %v1108 = vadd.f32 %v1103, 1.0
    %v1109 = vadd.f32 %v1105, 1.0
    %v1110 = vrcp.pop %v1106
    %v1111 = vmul.f32 1.0, %v1110
    %v1112 = vrcp.pop %v1107
    %v1113 = vmul.f32 1.0, %v1112
    %v1114 = vrcp.pop %v1108
    %v1115 = vmul.f32 1.0, %v1114
    %v1116 = vrcp.pop %v1109
    %v1117 = vmul.f32 1.0, %v1116
    %v1118 = vadd.f32 %v1111, %v57
    %v1119 = vadd.f32 %v1113, %v58
    %v1120 = vadd.f32 %v1115, %v59
    %v1121 = vadd.f32 %v1117, %v60
    %v1122 = vmax.f32 %v1118, 0.1
    %v1123 = vmax.f32 %v1119, 0.1
    %v1124 = vmax.f32 %v1120, 0.1
    %v1125 = vmax.f32 %v1121, 0.1
    %v1126 = vmin.f32 %v1122, 0.6
    %v1127 = vmin.f32 %v1123, 0.6
    %v1128 = vmin.f32 %v1124, 0.6
    %v1129 = vmin.f32 %v1125, 0.6
    %v1130 = vrcp.pop %v1126
    %v1131 = vrcp.pop %v1127
    %v1132 = vrcp.pop %v1128
    %v1133 = vrcp.pop %v1129
    %v1134 = vmul.f32 %v57, %v1130
    %v1135 = vmul.f32 %v58, %v1131
    %v1136 = vmul.f32 %v59, %v1132
    %v1137 = vmul.f32 %v60, %v1133
    %v1138 = vmax.f32 %v1134, 0.0
    %v1139 = vmax.f32 %v1135, 0.0
    %v1140 = vmax.f32 %v1136, 0.0
    %v1141 = vmax.f32 %v1137, 0.0
    %v1142 = vmin.f32 %v1138, 1.0
    %v1143 = vmin.f32 %v1139, 1.0
    %v1144 = vmin.f32 %v1140, 1.0
    %v1145 = vmin.f32 %v1141, 1.0
    %v1150 = vcombine.low %v1126, %v1127
    %v1151 = vcombine.low %v1128, %v1129
    %1154 = vst [vmem:[#allocation8] sm:$0x77] %v1150
    %1155 = vst [vmem:[#allocation8 + $0x8] sm:$0x77] %v1151
    %v1160 = vcombine.low %v1142, %v1143
    %v1161 = vcombine.low %v1144, %v1145
    %1164 = vst [vmem:[#allocation9] sm:$0x77] %v1160
    %1165 = vst [vmem:[#allocation9 + $0x8] sm:$0x77] %v1161
    // Predicated region
    $region26: #{tpu_custom_call.1} parent=1 // pred_check
      _
    $region27: #{tpu_custom_call.1} parent=1 // pred_check_branch
      %1167 = sbr.rel (0) target = $region29
    $region28: #{tpu_custom_call.1} parent=1 // pred_region
      %s1169 = ssub.s32 256, 256
      %1170 = vsyncadd [#allocation4], %s1169
      %s1172 = sshll.u32 [#allocation8], 4
      %s1173 = int_to_ptr.vmem [resolvable:$true] %s1172
      %1175 = dma.vmem_to_hbm [thread:$0]  %s1173, 256, %s3, [#allocation4]
    $region29: #{tpu_custom_call.1} parent=1 // pred_fallthru
      _
    // Predicated region
    $region30: #{tpu_custom_call.1} parent=1 // pred_check
      _
    $region31: #{tpu_custom_call.1} parent=1 // pred_check_branch
      %1177 = sbr.rel (0) target = $region33
    $region32: #{tpu_custom_call.1} parent=1 // pred_region
      %s1179 = ssub.s32 256, 256
      %1180 = vsyncadd [#allocation10], %s1179
      %s1182 = sshll.u32 [#allocation9], 4
      %s1183 = int_to_ptr.vmem [resolvable:$true] %s1182
      %1185 = dma.vmem_to_hbm [thread:$0]  %s1183, 256, %s4, [#allocation10]
    $region33: #{tpu_custom_call.1} parent=1 // pred_fallthru
      _
    // Predicated region
    $region34: #{tpu_custom_call.1} parent=1 // pred_check
      _
    $region35: #{tpu_custom_call.1} parent=1 // pred_check_branch
      %1187 = sbr.rel (0) target = $region37
    $region36: #{tpu_custom_call.1} parent=1 // pred_region
      %1188 = dma.done [#allocation4], 256
    $region37: #{tpu_custom_call.1} parent=1 // pred_fallthru
      _
    // Predicated region
    $region38: #{tpu_custom_call.1} parent=1 // pred_check
      _
    $region39: #{tpu_custom_call.1} parent=1 // pred_check_branch
      %1190 = sbr.rel (0) target = $region41
    $region40: #{tpu_custom_call.1} parent=1 // pred_region
      %1191 = dma.done [#allocation10], 256
    $region41: #{tpu_custom_call.1} parent=1 // pred_fallthru
      _
    %1192 = vsyncpa [#allocation3], 1
    %1193 = vsyncpa [#allocation6], 1
    %1194 = vsyncpa [#allocation4], 1
    %1195 = vsyncpa [#allocation10], 1

</llo_original>
